<compile_context>
chip_gen: v5e
topology: v5e:2x2
jax: 0.10.0
libtpu: 0.0.40
codegen_flags: <defaults>
</compile_context>

<pallas_src>
from typing import NamedTuple

import jax
import jax.numpy as jnp
from jax.experimental import pallas as pl
from jax.experimental.pallas import tpu as pltpu


def _round_up(n, m):
    return ((n + m - 1) // m) * m


def _vmem_capacity_bytes():
    """Physical per-TensorCore VMEM (128 MiB v5e/v6e, 64 MiB v7x)."""
    try:
        info = pltpu.get_tpu_info()
        cap = getattr(info, "vmem_capacity_bytes", None)
        if cap:
            return int(cap)
    except Exception:
        pass
    return 64 * 1024 * 1024  # conservative fallback (v7x)


def mlp_kernel(x_ref, w1_ref, b1_ref, w2_ref, b2_ref, o_ref):
    # hidden = relu(x @ W1 + b1); accumulate on the MXU in f32.
    h = jnp.dot(x_ref[...], w1_ref[...], preferred_element_type=jnp.float32)
    h = jnp.maximum(h + b1_ref[...], 0.0)  # f32 epilogue (v5e has no bf16 VPU)
    # out = hidden @ W2 + b2 (f32 accumulation, one cast on store).
    y = jnp.dot(h.astype(w2_ref.dtype), w2_ref[...],
                preferred_element_type=jnp.float32)
    o_ref[...] = (y + b2_ref[...]).astype(o_ref.dtype)


class MLPParams(NamedTuple):
    w1p: jax.Array   # (D_in_p, H_p)   compute dtype
    b1p: jax.Array   # (1, H_p)        float32
    w2p: jax.Array   # (H_p, D_out_p)  compute dtype
    b2p: jax.Array   # (1, D_out_p)    float32
    d_in: int
    d_out: int


def prepare_mlp_params(w1, b1, w2, b2, *, compute_dtype=None):
    """Pad + cast the weights ONCE (hoisted out of the per-call path).

    Weights are stored as (in_features, out_features), i.e. transposed vs.
    torch.nn.Linear.weight, so the math matches MLP.forward exactly.
    """
    w1 = jnp.asarray(w1)
    w2 = jnp.asarray(w2)
    d_in, h = w1.shape
    d_out = w2.shape[1]

    if compute_dtype is None:
        # bf16 operands halve the weight DMA bytes and run the MXU at its
        # native bf16 rate; keep f32 when the weights are tiny anyway.
        compute_dtype = jnp.bfloat16 if (d_in * h + h * d_out) >= (1 << 21) \
            else w1.dtype

    d_in_p = _round_up(d_in, 128)
    h_p = _round_up(h, 128)
    # Tiny D_out: keep the last dim unpadded (full-extent block, masked vst)
    # -> far fewer HBM output bytes and no separate column-slice op.
    d_out_p = _round_up(d_out, 128) if d_out >= 128 else d_out

    w1p = jnp.pad(w1.astype(compute_dtype), ((0, d_in_p - d_in), (0, h_p - h)))
    w2p = jnp.pad(w2.astype(compute_dtype), ((0, h_p - h), (0, d_out_p - d_out)))
    b1p = jnp.pad(jnp.asarray(b1, jnp.float32).reshape(1, -1),
                  ((0, 0), (0, h_p - h)))
    b2p = jnp.pad(jnp.asarray(b2, jnp.float32).reshape(1, -1),
                  ((0, 0), (0, d_out_p - d_out)))
    return MLPParams(w1p, b1p, w2p, b2p, d_in, d_out)


def mlp_forward(x, params: MLPParams, *, block_batch=1024,
                vmem_budget_bytes=None):
    """y = relu(x @ W1 + b1) @ W2 + b2 with pre-prepared (padded) weights."""
    B, D_in = x.shape
    assert D_in == params.d_in, "input feature dim mismatch"
    D_in_p, H_p = params.w1p.shape
    D_out_p = params.w2p.shape[1]
    D_out = params.d_out
    cd = params.w1p.dtype
    out_dtype = x.dtype
    x_bpe = jnp.dtype(cd).itemsize
    o_bpe = jnp.dtype(out_dtype).itemsize

    cap = _vmem_capacity_bytes()
    budget = vmem_budget_bytes if vmem_budget_bytes is not None else cap // 2

    weights_bytes = ((D_in_p * H_p + H_p * D_out_p) * x_bpe
                     + (H_p + D_out_p) * 4)

    def footprint(tm_):
        # Pallas double-buffers every input/output spec, weights included.
        act = 2 * tm_ * (D_in_p * x_bpe + D_out_p * o_bpe)
        hidden = tm_ * H_p * 4  # f32 intermediate between the two matmuls
        return 2 * weights_bytes + act + hidden

    # Batch tile: multiple of 8 sublanes, as large as the VMEM budget allows.
    tm = _round_up(min(block_batch, _round_up(B, 8)), 8)
    while tm > 8 and footprint(tm) > budget:
        tm = max(8, _round_up(tm // 2, 8))

    num_blocks = pl.cdiv(B, tm)
    if num_blocks > 1 and num_blocks % 2 == 1:
        # Even block count so v7x's two TensorCores get a balanced split.
        num_blocks += 1
    B_p = num_blocks * tm

    # Single pad HLO per call (fuses with the cast); zero rows/lanes are inert.
    xp = jnp.pad(x.astype(cd), ((0, B_p - B), (0, D_in_p - D_in)))
    out_shape = jax.ShapeDtypeStruct((B_p, D_out_p), out_dtype)

    if num_blocks == 1:
        # Single tile: skip the grid/pipeline entirely; whole operands in VMEM.
        total = (B_p * D_in_p * x_bpe + weights_bytes
                 + B_p * D_out_p * o_bpe + B_p * H_p * 4)
        limit = min(int(cap * 0.9), max(2 * total, 32 * 1024 * 1024))
        out_p = pl.pallas_call(
            mlp_kernel,
            out_shape=out_shape,
            in_specs=[pl.BlockSpec(memory_space=pltpu.MemorySpace.VMEM)] * 5,
            out_specs=pl.BlockSpec(memory_space=pltpu.MemorySpace.VMEM),
            compiler_params=pltpu.CompilerParams(vmem_limit_bytes=limit),
        )(xp, params.w1p, params.b1p, params.w2p, params.b2p)
    else:
        # Batch-tiled grid; weights keep a constant block index (VMEM resident).
        limit = min(int(cap * 0.9), max(2 * footprint(tm), 32 * 1024 * 1024))
        out_p = pl.pallas_call(
            mlp_kernel,
            out_shape=out_shape,
            grid=(num_blocks,),
            in_specs=[
                pl.BlockSpec((tm, D_in_p), lambda i: (i, 0)),
                pl.BlockSpec((D_in_p, H_p), lambda i: (0, 0)),
                pl.BlockSpec((1, H_p), lambda i: (0, 0)),
                pl.BlockSpec((H_p, D_out_p), lambda i: (0, 0)),
                pl.BlockSpec((1, D_out_p), lambda i: (0, 0)),
            ],
            out_specs=pl.BlockSpec((tm, D_out_p), lambda i: (i, 0)),
            compiler_params=pltpu.CompilerParams(
                dimension_semantics=("parallel",),
                vmem_limit_bytes=limit),
        )(xp, params.w1p, params.b1p, params.w2p, params.b2p)

    out = out_p[:B]
    if D_out_p != D_out:
        out = out[:, :D_out]
    return out


def mlp_forward_raw(x, w1, b1, w2, b2, *, compute_dtype=None, **kwargs):
    """Convenience wrapper: prepares weights on the fly (prefer preparing once)."""
    return mlp_forward(
        x, prepare_mlp_params(w1, b1, w2, b2, compute_dtype=compute_dtype),
        **kwargs)


def init_mlp_params(key, input_dim, output_dim, hidden_dim=128,
                    dtype=jnp.float32):
    """Deterministic init mirroring nn.Linear's U(-1/sqrt(fan_in), 1/sqrt(fan_in))."""
    k1, k2, k3, k4 = jax.random.split(key, 4)
    bound1 = 1.0 / jnp.sqrt(input_dim)
    bound2 = 1.0 / jnp.sqrt(hidden_dim)
    w1 = jax.random.uniform(k1, (input_dim, hidden_dim), dtype, -bound1, bound1)
    b1 = jax.random.uniform(k2, (1, hidden_dim), dtype, -bound1, bound1)
    w2 = jax.random.uniform(k3, (hidden_dim, output_dim), dtype, -bound2, bound2)
    b2 = jax.random.uniform(k4, (1, output_dim), dtype, -bound2, bound2)
    return w1, b1, w2, b2


if __name__ == "__main__":
    key = jax.random.PRNGKey(0)
    k_params, k_x, k_x2, k_x3 = jax.random.split(key, 4)

    # Policy-gradient MLP shapes (e.g. LunarLander obs=8, actions=4).
    batch, input_dim, output_dim, hidden_dim = 8, 8, 4, 128

    w1, b1, w2, b2 = init_mlp_params(k_params, input_dim, output_dim, hidden_dim)

    def ref_fn(xin):
        return jnp.maximum(xin @ w1 + b1, 0.0) @ w2 + b2

    # Prepare (pad + cast) the weights once; reuse across all calls below.
    params_f32 = prepare_mlp_params(w1, b1, w2, b2)            # stays f32 (tiny)
    params_bf16 = prepare_mlp_params(w1, b1, w2, b2,
                                     compute_dtype=jnp.bfloat16)

    x = jax.random.normal(k_x, (batch, input_dim), jnp.float32)
    ref = ref_fn(x)

    # 1) Single-tile (no grid) f32 path.
    out = jax.block_until_ready(mlp_forward(x, params_f32))
    assert out.shape == (batch, output_dim)
    assert jnp.allclose(out, ref, atol=1e-5, rtol=1e-5)

    # 2) Same inputs through the bf16 compute path (f32 MXU accumulation).
    out_bf16 = jax.block_until_ready(mlp_forward(x, params_bf16))
    assert jnp.allclose(out_bf16, ref, atol=1e-1, rtol=1e-1)

    # 3) Larger batch exercising the batch-tiled, weight-resident grid (4 even blocks).
    big_batch = 512
    xb = jax.random.normal(k_x2, (big_batch, input_dim), jnp.float32)
    outb = jax.block_until_ready(mlp_forward(xb, params_f32, block_batch=128))
    assert outb.shape == (big_batch, output_dim)
    assert jnp.allclose(outb, ref_fn(xb), atol=1e-5, rtol=1e-5)

    # 4) Odd block count gets rounded to even (v7x 2-TC balance) + batch padding.
    odd_batch = 300
    xc = jax.random.normal(k_x3, (odd_batch, input_dim), jnp.float32)
    outc = jax.block_until_ready(mlp_forward(xc, params_f32, block_batch=128))
    assert outc.shape == (odd_batch, output_dim)
    assert jnp.allclose(outc, ref_fn(xc), atol=1e-5, rtol=1e-5)

    # Convenience (unprepared) wrapper still works.
    outd = jax.block_until_ready(mlp_forward_raw(x, w1, b1, w2, b2))
    assert jnp.allclose(outd, ref, atol=1e-5, rtol=1e-5)

    print("KERNEL_OK")
</pallas_src>

<mosaic_0001>
module attributes {stable_mosaic.version = 11 : i64} {
  func.func @mlp_kernel(%arg0: memref<8x128xf32, #tpu.memory_space<vmem>>, %arg1: memref<128x128xf32, #tpu.memory_space<vmem>>, %arg2: memref<1x128xf32, #tpu.memory_space<vmem>>, %arg3: memref<128x4xf32, #tpu.memory_space<vmem>>, %arg4: memref<1x4xf32, #tpu.memory_space<vmem>>, %arg5: memref<8x4xf32, #tpu.memory_space<vmem>>) attributes {dimension_semantics = [], scalar_prefetch = 0 : i64, scratch_operands = 0 : i64, tpu.core_type = #tpu.core_type<tc>} {
    %c0 = arith.constant 0 : index
    %c0_0 = arith.constant 0 : index
    %0 = vector.load %arg0[%c0, %c0_0] : memref<8x128xf32, #tpu.memory_space<vmem>>, vector<8x128xf32>
    %c0_1 = arith.constant 0 : index
    %c0_2 = arith.constant 0 : index
    %1 = vector.load %arg1[%c0_1, %c0_2] : memref<128x128xf32, #tpu.memory_space<vmem>>, vector<128x128xf32>
    %cst = arith.constant dense<0.000000e+00> : vector<8x128xf32>
    %2 = tpu.matmul %0, %1, %cst {dimension_numbers = #tpu.dot_dimension_numbers<[1], [0], [0], [1], [0, 0, 1, 1], [], []>} : vector<8x128xf32>, vector<128x128xf32>, vector<8x128xf32> -> vector<8x128xf32>
    %c0_3 = arith.constant 0 : index
    %c0_4 = arith.constant 0 : index
    %3 = vector.load %arg2[%c0_3, %c0_4] : memref<1x128xf32, #tpu.memory_space<vmem>>, vector<1x128xf32>
    %4 = vector.broadcast %3 : vector<1x128xf32> to vector<8x128xf32>
    %5 = arith.addf %2, %4 : vector<8x128xf32>
    %cst_5 = arith.constant 0.000000e+00 : f32
    %6 = vector.broadcast %cst_5 : f32 to vector<8x128xf32>
    %7 = arith.maximumf %5, %6 : vector<8x128xf32>
    %c0_6 = arith.constant 0 : index
    %c0_7 = arith.constant 0 : index
    %8 = vector.load %arg3[%c0_6, %c0_7] : memref<128x4xf32, #tpu.memory_space<vmem>>, vector<128x4xf32>
    %cst_8 = arith.constant dense<0.000000e+00> : vector<8x4xf32>
    %9 = tpu.matmul %7, %8, %cst_8 {dimension_numbers = #tpu.dot_dimension_numbers<[1], [0], [0], [1], [0, 0, 1, 1], [], []>} : vector<8x128xf32>, vector<128x4xf32>, vector<8x4xf32> -> vector<8x4xf32>
    %c0_9 = arith.constant 0 : index
    %c0_10 = arith.constant 0 : index
    %10 = vector.load %arg4[%c0_9, %c0_10] : memref<1x4xf32, #tpu.memory_space<vmem>>, vector<1x4xf32>
    %11 = vector.broadcast %10 : vector<1x4xf32> to vector<8x4xf32>
    %12 = arith.addf %9, %11 : vector<8x4xf32>
    %c0_11 = arith.constant 0 : index
    %c0_12 = arith.constant 0 : index
    %13 = vector.load %arg5[%c0_11, %c0_12] : memref<8x4xf32, #tpu.memory_space<vmem>>, vector<8x4xf32>
    tpu.vector_store %arg5[%c0_11, %c0_12], %12 {strides = array<i32>} : memref<8x4xf32, #tpu.memory_space<vmem>>, vector<8x4xf32>,
    return
  }
}

</mosaic_0001>

<llo_original>
// kernel: tpu_custom_call.1
$region0: #{tpu_custom_call.1}
  #allocation0 [shape = 'u32[]', space=smem, size = 0x4, offset = 0x4, fixed_abs, tag = 'smem constant byte address 0x4 - core index']
  #allocation1 [shape = 'u32[72,128]{1,0:T(1,128)}', space=vmem, size = 0x9000, scoped, tag = 'internal scratch']
  %s0 = inlined_call_operand.hbm [shape: f32[8,128], index: 0, kind: input, shape index: {}]
  %s1 = inlined_call_operand.vmem [shape: f32[128,128], index: 1, kind: input, shape index: {}]
  %s2 = inlined_call_operand.vmem [shape: f32[1,128], index: 2, kind: input, shape index: {}]
  %s3 = inlined_call_operand.vmem [shape: f32[128,4], index: 3, kind: input, shape index: {}]
  %s4 = inlined_call_operand.vmem [shape: f32[1,4], index: 4, kind: input, shape index: {}]
  %s5 = inlined_call_operand.vmem [shape: f32[8,4], index: 5, kind: output, shape index: {}]
  %s6 = sld [smem:[#allocation0]]
  $region34: #{tpu_custom_call.1} parent=0
    _
  %s8 = ssub.s32 1, %s6
  %s9 = scalar_select 0, %s8, %s6
  $region1: #{tpu_custom_call.1} parent=0
    #allocation2 [shape = 'u8[4096]{0}', space=vmem, size = 0x1000, scoped, tag = 'input window, operand 0, single buffered']
    #allocation3 [shape = 's32[1]{0}', space=sflag, size = 0x4, scoped, tag = 'scoped memory for tpu_custom_call.1']
    %10 = vsyncpa [#allocation3], 0
    // Predicated region
    $region2: #{tpu_custom_call.1} parent=1 // pred_check
      _
    $region3: #{tpu_custom_call.1} parent=1 // pred_check_branch
      %12 = sbr.rel (0) target = $region5
    $region4: #{tpu_custom_call.1} parent=1 // pred_region
      %14 = vsyncadd [#allocation3], 0
      %s16 = sshll.u32 %s0, 4
      %s17 = int_to_ptr.hbm [resolvable:$true] %s16
      %s18 = sshll.u32 [#allocation2], 4
      %s19 = int_to_ptr.vmem [resolvable:$true] %s18
      %21 = dma.hbm_to_vmem [thread:$0]  %s17, 128, %s19, [#allocation3]
    $region5: #{tpu_custom_call.1} parent=1 // pred_fallthru
      _
    // Predicated region
    $region6: #{tpu_custom_call.1} parent=1 // pred_check
      _
    $region7: #{tpu_custom_call.1} parent=1 // pred_check_branch
      %23 = sbr.rel (0) target = $region9
    $region8: #{tpu_custom_call.1} parent=1 // pred_region
      _
    $region9: #{tpu_custom_call.1} parent=1 // pred_fallthru
      _
    // Predicated region
    $region10: #{tpu_custom_call.1} parent=1 // pred_check
      _
    $region11: #{tpu_custom_call.1} parent=1 // pred_check_branch
      %25 = sbr.rel (0) target = $region13
    $region12: #{tpu_custom_call.1} parent=1 // pred_region
      _
    $region13: #{tpu_custom_call.1} parent=1 // pred_fallthru
      _
    // Predicated region
    $region14: #{tpu_custom_call.1} parent=1 // pred_check
      _
    $region15: #{tpu_custom_call.1} parent=1 // pred_check_branch
      %27 = sbr.rel (0) target = $region17
    $region16: #{tpu_custom_call.1} parent=1 // pred_region
      _
    $region17: #{tpu_custom_call.1} parent=1 // pred_fallthru
      _
    // Predicated region
    $region18: #{tpu_custom_call.1} parent=1 // pred_check
      _
    $region19: #{tpu_custom_call.1} parent=1 // pred_check_branch
      %29 = sbr.rel (0) target = $region21
    $region20: #{tpu_custom_call.1} parent=1 // pred_region
      _
    $region21: #{tpu_custom_call.1} parent=1 // pred_fallthru
      _
    // Predicated region
    $region22: #{tpu_custom_call.1} parent=1 // pred_check
      _
    $region23: #{tpu_custom_call.1} parent=1 // pred_check_branch
      %31 = sbr.rel (0) target = $region25
    $region24: #{tpu_custom_call.1} parent=1 // pred_region
      %33 = dma.done [#allocation3], 128
    $region25: #{tpu_custom_call.1} parent=1 // pred_fallthru
      _
    %v34 = vld [vmem:[#allocation2] sm:$0xff]
    %v35 = vld [vmem:[%s1] sm:$0xff]
    %v36 = vld [vmem:[%s1 + $0x8] sm:$0xff]
    %v37 = vld [vmem:[%s1 + $0x10] sm:$0xff]
    %v38 = vld [vmem:[%s1 + $0x18] sm:$0xff]
    %v39 = vld [vmem:[%s1 + $0x20] sm:$0xff]
    %v40 = vld [vmem:[%s1 + $0x28] sm:$0xff]
    %v41 = vld [vmem:[%s1 + $0x30] sm:$0xff]
    %v42 = vld [vmem:[%s1 + $0x38] sm:$0xff]
    %v43 = vld [vmem:[%s1 + $0x40] sm:$0xff]
    %v44 = vld [vmem:[%s1 + $0x48] sm:$0xff]
    %v45 = vld [vmem:[%s1 + $0x50] sm:$0xff]
    %v46 = vld [vmem:[%s1 + $0x58] sm:$0xff]
    %v47 = vld [vmem:[%s1 + $0x60] sm:$0xff]
    %v48 = vld [vmem:[%s1 + $0x68] sm:$0xff]
    %v49 = vld [vmem:[%s1 + $0x70] sm:$0xff]
    %v50 = vld [vmem:[%s1 + $0x78] sm:$0xff]
    %v51 = vld [vmem:[%s2] sm:$0x1]
    %v53 = vperm.slane %v51, 0
    %55 = vmatpush.msra.mxu0 %v50
    %56 = vmatpush.msra.mxu0 %v49
    %57 = vmatpush.msra.mxu0 %v48
    %58 = vmatpush.msra.mxu0 %v47
    %59 = vmatpush.msra.mxu0 %v46
    %60 = vmatpush.msra.mxu0 %v45
    %61 = vmatpush.msra.mxu0 %v44
    %62 = vmatpush.msra.mxu0 %v43
    %63 = vmatpush.msra.mxu0 %v42
    %64 = vmatpush.msra.mxu0 %v41
    %65 = vmatpush.msra.mxu0 %v40
    %66 = vmatpush.msra.mxu0 %v39
    %67 = vmatpush.msra.mxu0 %v38
    %68 = vmatpush.msra.mxu0 %v37
    %69 = vmatpush.msra.mxu0 %v36
    %70 = vmatpush.msra.mxu0 %v35
    %71 = vmatmul.f32.gmra.mxu0 %v34
    %v72 = vpop.f32.mrf.mxu0
    %v73 = vadd.f32 %v53, %v72
    %74 = vdwg.mxu0
    %v75 = vmax.f32 %v73, 0.0
    %v76 = vld [vmem:[%s3] sm:$0xff]
    %v77 = vld [vmem:[%s3 + $0x8] sm:$0xff]
    %v78 = vld [vmem:[%s3 + $0x10] sm:$0xff]
    %v79 = vld [vmem:[%s3 + $0x18] sm:$0xff]
    %v80 = vld [vmem:[%s3 + $0x20] sm:$0xff]
    %v81 = vld [vmem:[%s3 + $0x28] sm:$0xff]
    %v82 = vld [vmem:[%s3 + $0x30] sm:$0xff]
    %v83 = vld [vmem:[%s3 + $0x38] sm:$0xff]
    %v84 = vld [vmem:[%s3 + $0x40] sm:$0xff]
    %v85 = vld [vmem:[%s3 + $0x48] sm:$0xff]
    %v86 = vld [vmem:[%s3 + $0x50] sm:$0xff]
    %v87 = vld [vmem:[%s3 + $0x58] sm:$0xff]
    %v88 = vld [vmem:[%s3 + $0x60] sm:$0xff]
    %v89 = vld [vmem:[%s3 + $0x68] sm:$0xff]
    %v90 = vld [vmem:[%s3 + $0x70] sm:$0xff]
    %v91 = vld [vmem:[%s3 + $0x78] sm:$0xff]
    %v92 = vld [vmem:[%s4] sm:$0x1]
    %v94 = vperm.slane %v92, 0
    %96 = vmatpush.msra.mxu0 %v91
    %97 = vmatpush.msra.mxu0 %v90
    %98 = vmatpush.msra.mxu0 %v89
    %99 = vmatpush.msra.mxu0 %v88
    %100 = vmatpush.msra.mxu0 %v87
    %101 = vmatpush.msra.mxu0 %v86
    %102 = vmatpush.msra.mxu0 %v85
    %103 = vmatpush.msra.mxu0 %v84
    %104 = vmatpush.msra.mxu0 %v83
    %105 = vmatpush.msra.mxu0 %v82
    %106 = vmatpush.msra.mxu0 %v81
    %107 = vmatpush.msra.mxu0 %v80
    %108 = vmatpush.msra.mxu0 %v79
    %109 = vmatpush.msra.mxu0 %v78
    %110 = vmatpush.msra.mxu0 %v77
    %111 = vmatpush.msra.mxu0 %v76
    %112 = vmatmul.f32.gmra.mxu0 %v75
    %v113 = vpop.f32.mrf.mxu0
    %v114 = vadd.f32 %v94, %v113
    %115 = vdwg.mxu0
    %vm116 = vcmask 31744
    %117 = vst.msk [vmem:[%s5] sm:$0xff] %vm116, %v114
    // Predicated region
    $region26: #{tpu_custom_call.1} parent=1 // pred_check
      _
    $region27: #{tpu_custom_call.1} parent=1 // pred_check_branch
      %119 = sbr.rel (0) target = $region29
    $region28: #{tpu_custom_call.1} parent=1 // pred_region
      _
    $region29: #{tpu_custom_call.1} parent=1 // pred_fallthru
      _
    // Predicated region
    $region30: #{tpu_custom_call.1} parent=1 // pred_check
      _
    $region31: #{tpu_custom_call.1} parent=1 // pred_check_branch
      %121 = sbr.rel (0) target = $region33
    $region32: #{tpu_custom_call.1} parent=1 // pred_region
      _
    $region33: #{tpu_custom_call.1} parent=1 // pred_fallthru
      _
    %122 = vsyncpa [#allocation3], 1

</llo_original>
